<compile_context>
chip_gen: v5e
topology: v5e:2x2
jax: 0.10.0
libtpu: 0.0.40
codegen_flags: <defaults>
</compile_context>

<pallas_src>
import jax
import jax.numpy as jnp
from jax.experimental import pallas as pl
from jax.experimental.pallas import tpu as pltpu


_LANE = 512       # lane-dense width: multiple of 128 -> unmasked full-lane vst
_ROW_TILE = 1024  # max rows per tile: 1024*512*4B = 2 MiB per f32 buffer


# ---------------------------------------------------------------------------
# Layout helpers (reshape is a bitcast; pad/slice only for non-aligned sizes)
# ---------------------------------------------------------------------------
def _round_up(x, m):
    return -(-x // m) * m


def _slab_rows(total):
    """Row count of the lane-dense (rows, _LANE) slab for `total` elements."""
    rows = -(-total // _LANE)                 # ceil(total / _LANE)
    if rows > 8:
        rows = _round_up(rows, 8)             # sublane-aligned -> unmasked vst
    return rows


def _tile_rows(rows):
    """Rows per grid step: big enough to amortize per-step overhead, small
    enough to fit VMEM everywhere, and >= 4 grid steps for v7x's 2 TCs."""
    if rows <= 8:
        return rows                           # single full-dim block (tiny input)
    tr = _round_up(-(-rows // 4), 8)          # round_up(cdiv(rows, 4), 8)
    return max(8, min(_ROW_TILE, tr))


def _to_slab(x, rows):
    flat = jnp.ravel(x)                       # contiguous -> bitcast reshape
    pad = rows * _LANE - flat.size
    if pad:                                   # only when total % 512 != 0 (or <8 rows pad)
        flat = jnp.pad(flat, (0, pad))
    return flat.reshape(rows, _LANE)


def _from_slab(slab, total, shape):
    flat = slab.reshape(-1)
    if flat.size != total:                    # slice only when we actually padded
        flat = flat[:total]
    return flat.reshape(shape)


# ---------------------------------------------------------------------------
# Kernels (dtype casts happen on the VMEM tile — free VPU slack)
# ---------------------------------------------------------------------------
def _sub_tensor_kernel(a_ref, b_ref, o_ref):
    # c = a - b ; out = c - c   (preserves torch's NaN/Inf propagation)
    a = a_ref[...].astype(o_ref.dtype)
    b = b_ref[...].astype(o_ref.dtype)
    c = a - b
    o_ref[...] = c - c


def _square_sub_scalar_kernel(b_ref, a_ref, o_ref):
    # out = a*a - b_scalar ; scalar lives in SMEM (one sld per tile)
    a = a_ref[...].astype(o_ref.dtype)
    b = b_ref[0].astype(o_ref.dtype)
    o_ref[...] = a * a - b


# ---------------------------------------------------------------------------
# Wrapper (mirrors SimpleSubtractModel.forward)
# ---------------------------------------------------------------------------
def simple_subtract_model(a, b):
    a = jnp.asarray(a)
    b = jnp.asarray(b)

    if b.ndim == 0:
        # (a * a).sub(b.item()): python-scalar sub keeps a's (floating) dtype;
        # integer `a` promotes to float32 like torch's default float dtype.
        out_dtype = a.dtype if jnp.issubdtype(a.dtype, jnp.floating) else jnp.float32
        out_shape = a.shape
        total = a.size
        rows = _slab_rows(total)
        tr = _tile_rows(rows)
        grid = (pl.cdiv(rows, tr),)

        a_slab = _to_slab(a, rows)
        b_smem = jnp.reshape(b.astype(jnp.float32), (1,))

        slab_bytes = rows * _LANE * (a_slab.dtype.itemsize
                                     + jnp.dtype(out_dtype).itemsize)
        out_slab = pl.pallas_call(
            _square_sub_scalar_kernel,
            out_shape=jax.ShapeDtypeStruct((rows, _LANE), out_dtype),
            grid=grid,
            in_specs=[
                pl.BlockSpec(memory_space=pltpu.MemorySpace.SMEM),   # scalar b
                pl.BlockSpec((tr, _LANE), lambda i: (i, 0)),         # a tile
            ],
            out_specs=pl.BlockSpec((tr, _LANE), lambda i: (i, 0)),
            compiler_params=pltpu.CompilerParams(
                dimension_semantics=("parallel",)),
            cost_estimate=pl.CostEstimate(
                flops=2 * rows * _LANE,
                transcendentals=0,
                bytes_accessed=slab_bytes + 4),
        )(b_smem, a_slab)
        return _from_slab(out_slab, total, out_shape)

    else:
        # tensor branch: c = a - b ; return c - c (broadcasting like torch)
        out_shape = jnp.broadcast_shapes(a.shape, b.shape)
        out_dtype = jnp.result_type(a.dtype, b.dtype)
        # Only materialize a broadcast when shapes actually differ; dtype casts
        # happen inside the kernel, avoiding extra HBM passes.
        if a.shape != out_shape:
            a = jnp.broadcast_to(a, out_shape)
        if b.shape != out_shape:
            b = jnp.broadcast_to(b, out_shape)

        total = 1
        for d in out_shape:
            total *= d
        rows = _slab_rows(total)
        tr = _tile_rows(rows)
        grid = (pl.cdiv(rows, tr),)

        a_slab = _to_slab(a, rows)
        b_slab = _to_slab(b, rows)

        slab_bytes = rows * _LANE * (a_slab.dtype.itemsize
                                     + b_slab.dtype.itemsize
                                     + jnp.dtype(out_dtype).itemsize)
        out_slab = pl.pallas_call(
            _sub_tensor_kernel,
            out_shape=jax.ShapeDtypeStruct((rows, _LANE), out_dtype),
            grid=grid,
            in_specs=[
                pl.BlockSpec((tr, _LANE), lambda i: (i, 0)),
                pl.BlockSpec((tr, _LANE), lambda i: (i, 0)),
            ],
            out_specs=pl.BlockSpec((tr, _LANE), lambda i: (i, 0)),
            compiler_params=pltpu.CompilerParams(
                dimension_semantics=("parallel",)),
            cost_estimate=pl.CostEstimate(
                flops=2 * rows * _LANE,
                transcendentals=0,
                bytes_accessed=slab_bytes),
        )(a_slab, b_slab)
        return _from_slab(out_slab, total, out_shape)


# ---------------------------------------------------------------------------
# Main
# ---------------------------------------------------------------------------
if __name__ == "__main__":
    key = jax.random.PRNGKey(0)
    k1, k2, k3, k4, k5 = jax.random.split(key, 5)

    # --- Tensor-tensor branch (NCHW shape from sub_test; 2048 elems = 4 rows,
    #     lane-aligned -> zero pad/slice copies) ---
    a = jax.random.normal(k1, (2, 4, 16, 16), dtype=jnp.float32)
    b = jax.random.normal(k2, (2, 4, 16, 16), dtype=jnp.float32)

    out_tensor = simple_subtract_model(a, b)
    jax.block_until_ready(out_tensor)
    c = a - b
    ref_tensor = c - c
    assert out_tensor.shape == ref_tensor.shape
    assert out_tensor.dtype == ref_tensor.dtype
    assert jnp.allclose(out_tensor, ref_tensor, atol=1e-6)

    # --- Scalar branch ((a * a).sub(b.item())) ---
    b_scalar = jax.random.normal(k3, (), dtype=jnp.float32)
    out_scalar = simple_subtract_model(a, b_scalar)
    jax.block_until_ready(out_scalar)
    ref_scalar = a * a - b_scalar
    assert out_scalar.shape == ref_scalar.shape
    assert out_scalar.dtype == ref_scalar.dtype
    assert jnp.allclose(out_scalar, ref_scalar, atol=1e-6)

    # --- Non-lane-aligned shape (exercises the pad/slice tail path) ---
    a2 = jax.random.normal(k4, (3, 5, 7, 9), dtype=jnp.float32)
    b2 = jax.random.normal(k5, (3, 5, 7, 9), dtype=jnp.float32)
    out2 = simple_subtract_model(a2, b2)
    jax.block_until_ready(out2)
    c2 = a2 - b2
    ref2 = c2 - c2
    assert out2.shape == ref2.shape
    assert jnp.allclose(out2, ref2, atol=1e-6)

    out2s = simple_subtract_model(a2, b_scalar)
    jax.block_until_ready(out2s)
    ref2s = a2 * a2 - b_scalar
    assert out2s.shape == ref2s.shape
    assert jnp.allclose(out2s, ref2s, atol=1e-6)

    print("KERNEL_OK")
</pallas_src>

<mosaic_0001>
module attributes {stable_mosaic.version = 11 : i64} {
  func.func @_sub_tensor_kernel(%arg0: i32, %arg1: memref<4x512xf32, #tpu.memory_space<vmem>>, %arg2: memref<4x512xf32, #tpu.memory_space<vmem>>, %arg3: memref<4x512xf32, #tpu.memory_space<vmem>>) attributes {dimension_semantics = [#tpu.dimension_semantics<parallel>], iteration_bounds = array<i64: 1>, scalar_prefetch = 0 : i64, scratch_operands = 0 : i64, tpu.core_type = #tpu.core_type<tc>, window_params = [{transform_indices = @transform_0, window_bounds = array<i64: 4, 512>}, {transform_indices = @transform_1, window_bounds = array<i64: 4, 512>}, {transform_indices = @transform_2, window_bounds = array<i64: 4, 512>}]} {
    %c0 = arith.constant 0 : index
    %c0_0 = arith.constant 0 : index
    %0 = vector.load %arg1[%c0, %c0_0] : memref<4x512xf32, #tpu.memory_space<vmem>>, vector<4x512xf32>
    %c0_1 = arith.constant 0 : index
    %c0_2 = arith.constant 0 : index
    %1 = vector.load %arg2[%c0_1, %c0_2] : memref<4x512xf32, #tpu.memory_space<vmem>>, vector<4x512xf32>
    %2 = arith.subf %0, %1 : vector<4x512xf32>
    %3 = arith.subf %2, %2 : vector<4x512xf32>
    %c0_3 = arith.constant 0 : index
    %c0_4 = arith.constant 0 : index
    %4 = vector.load %arg3[%c0_3, %c0_4] : memref<4x512xf32, #tpu.memory_space<vmem>>, vector<4x512xf32>
    tpu.vector_store %arg3[%c0_3, %c0_4], %3 {strides = array<i32>} : memref<4x512xf32, #tpu.memory_space<vmem>>, vector<4x512xf32>,
    return
  }
  func.func @transform_0(%arg0: i32) -> (i32, i32) {
    %c0_i32 = arith.constant 0 : i32
    %c0_i32_0 = arith.constant 0 : i32
    return %arg0, %c0_i32 : i32, i32
  }
  func.func @transform_1(%arg0: i32) -> (i32, i32) {
    %c0_i32 = arith.constant 0 : i32
    %c0_i32_0 = arith.constant 0 : i32
    return %arg0, %c0_i32 : i32, i32
  }
  func.func @transform_2(%arg0: i32) -> (i32, i32) {
    %c0_i32 = arith.constant 0 : i32
    %c0_i32_0 = arith.constant 0 : i32
    return %arg0, %c0_i32 : i32, i32
  }
}

</mosaic_0001>

<llo_original>
// kernel: tpu_custom_call.1
$region0: #{tpu_custom_call.1}
  #allocation0 [shape = 'u32[]', space=smem, size = 0x4, offset = 0x4, fixed_abs, tag = 'smem constant byte address 0x4 - core index']
  #allocation1 [shape = 'u32[72,128]{1,0:T(1,128)}', space=vmem, size = 0x9000, scoped, tag = 'internal scratch']
  %s0 = inlined_call_operand.hbm [shape: f32[4,512], index: 0, kind: input, shape index: {}]
  %s1 = inlined_call_operand.hbm [shape: f32[4,512], index: 1, kind: input, shape index: {}]
  %s2 = inlined_call_operand.hbm [shape: f32[4,512], index: 2, kind: output, shape index: {}]
  %s3 = sld [smem:[#allocation0]]
  $region26: #{tpu_custom_call.1} parent=0
    _
  %s5 = ssub.s32 1, %s3
  %s6 = scalar_select 0, %s5, %s3
  $region1: #{tpu_custom_call.1} parent=0
    #allocation2 [shape = 'u8[8192]{0}', space=vmem, size = 0x2000, scoped, tag = 'input window, operand 0, single buffered']
    #allocation3 [shape = 's32[1]{0}', space=sflag, size = 0x4, scoped, tag = 'scoped memory for tpu_custom_call.1']
    #allocation4 [shape = 's32[1]{0}', space=sflag, size = 0x4, scoped, tag = 'scoped memory for tpu_custom_call.1']
    #allocation5 [shape = 'u8[8192]{0}', space=vmem, size = 0x2000, scoped, tag = 'input window, operand 1, single buffered']
    #allocation6 [shape = 's32[1]{0}', space=sflag, size = 0x4, scoped, tag = 'scoped memory for tpu_custom_call.1']
    #allocation7 [shape = 'u8[8192]{0}', space=vmem, size = 0x2000, scoped, tag = 'output window, operand 0, single buffered']
    %7 = vsyncpa [#allocation3], 0
    %8 = vsyncpa [#allocation6], 0
    %9 = vsyncpa [#allocation4], 0
    // Predicated region
    $region2: #{tpu_custom_call.1} parent=1 // pred_check
      _
    $region3: #{tpu_custom_call.1} parent=1 // pred_check_branch
      %11 = sbr.rel (0) target = $region5
    $region4: #{tpu_custom_call.1} parent=1 // pred_region
      %13 = vsyncadd [#allocation3], 0
      %s15 = sshll.u32 %s0, 4
      %s16 = int_to_ptr.hbm [resolvable:$true] %s15
      %s17 = sshll.u32 [#allocation2], 4
      %s18 = int_to_ptr.vmem [resolvable:$true] %s17
      %20 = dma.hbm_to_vmem [thread:$0]  %s16, 256, %s18, [#allocation3]
    $region5: #{tpu_custom_call.1} parent=1 // pred_fallthru
      _
    // Predicated region
    $region6: #{tpu_custom_call.1} parent=1 // pred_check
      _
    $region7: #{tpu_custom_call.1} parent=1 // pred_check_branch
      %22 = sbr.rel (0) target = $region9
    $region8: #{tpu_custom_call.1} parent=1 // pred_region
      %24 = vsyncadd [#allocation6], 0
      %s26 = sshll.u32 %s1, 4
      %s27 = int_to_ptr.hbm [resolvable:$true] %s26
      %s28 = sshll.u32 [#allocation5], 4
      %s29 = int_to_ptr.vmem [resolvable:$true] %s28
      %31 = dma.hbm_to_vmem [thread:$0]  %s27, 256, %s29, [#allocation6]
    $region9: #{tpu_custom_call.1} parent=1 // pred_fallthru
      _
    // Predicated region
    $region10: #{tpu_custom_call.1} parent=1 // pred_check
      _
    $region11: #{tpu_custom_call.1} parent=1 // pred_check_branch
      %33 = sbr.rel (0) target = $region13
    $region12: #{tpu_custom_call.1} parent=1 // pred_region
      %35 = dma.done [#allocation3], 256
    $region13: #{tpu_custom_call.1} parent=1 // pred_fallthru
      _
    // Predicated region
    $region14: #{tpu_custom_call.1} parent=1 // pred_check
      _
    $region15: #{tpu_custom_call.1} parent=1 // pred_check_branch
      %37 = sbr.rel (0) target = $region17
    $region16: #{tpu_custom_call.1} parent=1 // pred_region
      %39 = dma.done [#allocation6], 256
    $region17: #{tpu_custom_call.1} parent=1 // pred_fallthru
      _
    %v40 = vld [vmem:[#allocation2] sm:$0xff]
    %v41 = vld [vmem:[#allocation2 + $0x8] sm:$0xff]
    %v42 = vld [vmem:[#allocation5] sm:$0xff]
    %v43 = vld [vmem:[#allocation5 + $0x8] sm:$0xff]
    %v44 = vsub.f32 %v40, %v42
    %v45 = vsub.f32 %v41, %v43
    %v46 = vsub.f32 %v44, %v44
    %v47 = vsub.f32 %v45, %v45
    %48 = vst [vmem:[#allocation7] sm:$0xff] %v46
    %49 = vst [vmem:[#allocation7 + $0x8] sm:$0xff] %v47
    // Predicated region
    $region18: #{tpu_custom_call.1} parent=1 // pred_check
      _
    $region19: #{tpu_custom_call.1} parent=1 // pred_check_branch
      %51 = sbr.rel (0) target = $region21
    $region20: #{tpu_custom_call.1} parent=1 // pred_region
      %53 = vsyncadd [#allocation4], 0
      %s55 = sshll.u32 [#allocation7], 4
      %s56 = int_to_ptr.vmem [resolvable:$true] %s55
      %s57 = sshll.u32 %s2, 4
      %s58 = int_to_ptr.hbm [resolvable:$true] %s57
      %60 = dma.vmem_to_hbm [thread:$0]  %s56, 256, %s58, [#allocation4]
    $region21: #{tpu_custom_call.1} parent=1 // pred_fallthru
      _
    // Predicated region
    $region22: #{tpu_custom_call.1} parent=1 // pred_check
      _
    $region23: #{tpu_custom_call.1} parent=1 // pred_check_branch
      %62 = sbr.rel (0) target = $region25
    $region24: #{tpu_custom_call.1} parent=1 // pred_region
      %64 = dma.done [#allocation4], 256
    $region25: #{tpu_custom_call.1} parent=1 // pred_fallthru
      _
    %65 = vsyncpa [#allocation3], 1
    %66 = vsyncpa [#allocation6], 1
    %67 = vsyncpa [#allocation4], 1

</llo_original>
